<compile_context>
chip_gen: v6e
topology: v6e:2x2x1
jax: 0.10.0
libtpu: 0.0.40
codegen_flags: <defaults>
</compile_context>

<pallas_src>
import jax
import jax.numpy as jnp
from jax import lax
from jax.experimental import pallas as pl
from jax.experimental.pallas import tpu as pltpu


def _gru_seq_kernel(h0_ref, x_ref, wih_ref, whh_ref, h_out_ref):
    # h0_ref   : (1, B, H)   initial hidden state
    # x_ref    : (S, B, M)   full message sequence (VMEM resident)
    # wih_ref  : (M, 3H)     fused input weights, gate columns [r | z | n]
    # whh_ref  : (H, 3H)     fused hidden weights, gate columns [r | z | n]
    # h_out_ref: (1, B, H)   final hidden state
    S = x_ref.shape[0]
    H = h0_ref.shape[2]

    # Loaded once for the whole recurrence (single grid step).
    wih = wih_ref[...].astype(jnp.float32)
    whh = whh_ref[...].astype(jnp.float32)
    h0 = h0_ref[0].astype(jnp.float32)                                 # (B, H)

    def step(t, h):
        x = x_ref[t].astype(jnp.float32)                               # (B, M)
        # Two fused MXU matmuls instead of six per-gate ones.
        gi = jnp.dot(x, wih, preferred_element_type=jnp.float32)       # (B, 3H)
        gh = jnp.dot(h, whh, preferred_element_type=jnp.float32)       # (B, 3H)

        # GRU gates (bias=False), PyTorch semantics, gate order [r, z, n].
        r = jax.nn.sigmoid(gi[:, 0 * H:1 * H] + gh[:, 0 * H:1 * H])
        z = jax.nn.sigmoid(gi[:, 1 * H:2 * H] + gh[:, 1 * H:2 * H])
        n = jnp.tanh(gi[:, 2 * H:3 * H] + r * gh[:, 2 * H:3 * H])
        # (1 - z) * n + z * h  ==  n + z * (h - n)   (one fewer VALU op)
        return n + z * (h - n)

    h_final = lax.fori_loop(0, S, step, h0, unroll=True)
    h_out_ref[0] = h_final.astype(h_out_ref.dtype)


def prepare_gru_weights(w_ih, w_hh):
    """One-time layout change of torch.nn.GRU weights for the Pallas kernel.

    w_ih: (3H, M) -> (M, 3H);  w_hh: (3H, H) -> (H, 3H).
    Gate order [r, z, n] is preserved along the fused output (lane) dim.
    Call once outside the per-step hot path (the transpose would otherwise be
    a separate XLA op on every forward call).
    """
    return jnp.asarray(w_ih).T, jnp.asarray(w_hh).T


def gru_update(h_v, m_v, wih_cat, whh_cat):
    """Pallas implementation of UpdateFunction.u_gru (1 layer, bias=False).

    h_v     : (1, B, H)  initial hidden
    m_v     : (S, B, M)  message sequence
    wih_cat : (M, 3H)    pre-laid-out input weights  (see prepare_gru_weights)
    whh_cat : (H, 3H)    pre-laid-out hidden weights
    returns h_n: (1, B, H)
    """
    S, B, M = m_v.shape
    _, _, H = h_v.shape
    assert wih_cat.shape == (M, 3 * H)
    assert whh_cat.shape == (H, 3 * H)
    # NOTE: blocks equal full array dims, so the (8,128) tiling constraint is
    # satisfied for these small shapes. If H/B are scaled up, pad H so 3H is a
    # multiple of 128 (256 on v6e/v7x) and re-budget VMEM (64 MiB on v7x).

    return pl.pallas_call(
        _gru_seq_kernel,
        out_shape=jax.ShapeDtypeStruct((1, B, H), h_v.dtype),
        grid_spec=pltpu.PrefetchScalarGridSpec(
            num_scalar_prefetch=0,
            grid=(1,),  # whole recurrence in one kernel invocation
            in_specs=[
                pl.BlockSpec((1, B, H), lambda i: (0, 0, 0)),      # h0
                pl.BlockSpec((S, B, M), lambda i: (0, 0, 0)),      # full sequence
                pl.BlockSpec((M, 3 * H), lambda i: (0, 0)),        # fused w_ih
                pl.BlockSpec((H, 3 * H), lambda i: (0, 0)),        # fused w_hh
            ],
            out_specs=pl.BlockSpec((1, B, H), lambda i: (0, 0, 0)),
        ),
        compiler_params=pltpu.CompilerParams(
            dimension_semantics=("arbitrary",),
        ),
    )(h_v, m_v, wih_cat, whh_cat)


def gru_update_ref(h_v, m_v, w_ih, w_hh):
    """Pure-JAX reference of torch.nn.GRU (1 layer, bias=False)."""
    H = h_v.shape[-1]
    w_ir, w_iz, w_in = w_ih[:H], w_ih[H:2 * H], w_ih[2 * H:]
    w_hr, w_hz, w_hn = w_hh[:H], w_hh[H:2 * H], w_hh[2 * H:]
    h = h_v[0]
    for t in range(m_v.shape[0]):
        x = m_v[t]
        r = jax.nn.sigmoid(x @ w_ir.T + h @ w_hr.T)
        z = jax.nn.sigmoid(x @ w_iz.T + h @ w_hz.T)
        n = jnp.tanh(x @ w_in.T + r * (h @ w_hn.T))
        h = (1.0 - z) * n + z * h
    return h[None]


if __name__ == "__main__":
    # shapes consistent with UpdateFunction('gru', message_size=32,
    # node_feature_size=32): seq=4, batch=8
    S, B, M, H = 4, 8, 32, 32

    key = jax.random.PRNGKey(0)
    k_h, k_m, k_wi, k_wh = jax.random.split(key, 4)

    h_v = jax.random.normal(k_h, (1, B, H), dtype=jnp.float32)
    m_v = jax.random.normal(k_m, (S, B, M), dtype=jnp.float32)

    # deterministic params matching torch.nn.GRU shapes, uniform(-1/sqrt(H), 1/sqrt(H))
    bound = 1.0 / jnp.sqrt(jnp.float32(H))
    w_ih = jax.random.uniform(k_wi, (3 * H, M), jnp.float32, -bound, bound)
    w_hh = jax.random.uniform(k_wh, (3 * H, H), jnp.float32, -bound, bound)

    # one-time weight layout (outside the hot path)
    wih_cat, whh_cat = prepare_gru_weights(w_ih, w_hh)

    h_n = gru_update(h_v, m_v, wih_cat, whh_cat)
    jax.block_until_ready(h_n)

    h_ref = gru_update_ref(h_v, m_v, w_ih, w_hh)
    assert jnp.allclose(h_n, h_ref, atol=1e-5, rtol=1e-5), "mismatch vs reference"

    print("KERNEL_OK")
</pallas_src>

<mosaic_0001>
module attributes {stable_mosaic.version = 11 : i64} {
  func.func @_gru_seq_kernel(%arg0: i32, %arg1: memref<1x8x32xf32, #tpu.memory_space<vmem>>, %arg2: memref<4x8x32xf32, #tpu.memory_space<vmem>>, %arg3: memref<32x96xf32, #tpu.memory_space<vmem>>, %arg4: memref<32x96xf32, #tpu.memory_space<vmem>>, %arg5: memref<1x8x32xf32, #tpu.memory_space<vmem>>) attributes {dimension_semantics = [#tpu.dimension_semantics<arbitrary>], iteration_bounds = array<i64: 1>, scalar_prefetch = 0 : i64, scratch_operands = 0 : i64, tpu.core_type = #tpu.core_type<tc>, window_params = [{pipeline_mode = #tpu.pipeline_mode<synchronous>, transform_indices = @transform_0, window_bounds = array<i64: 1, 8, 32>}, {pipeline_mode = #tpu.pipeline_mode<synchronous>, transform_indices = @transform_1, window_bounds = array<i64: 4, 8, 32>}, {pipeline_mode = #tpu.pipeline_mode<synchronous>, transform_indices = @transform_2, window_bounds = array<i64: 32, 96>}, {pipeline_mode = #tpu.pipeline_mode<synchronous>, transform_indices = @transform_3, window_bounds = array<i64: 32, 96>}, {pipeline_mode = #tpu.pipeline_mode<synchronous>, transform_indices = @transform_4, window_bounds = array<i64: 1, 8, 32>}]} {
    %c0 = arith.constant 0 : index
    %c0_0 = arith.constant 0 : index
    %0 = vector.load %arg3[%c0, %c0_0] : memref<32x96xf32, #tpu.memory_space<vmem>>, vector<32x96xf32>
    %c0_1 = arith.constant 0 : index
    %c0_2 = arith.constant 0 : index
    %1 = vector.load %arg4[%c0_1, %c0_2] : memref<32x96xf32, #tpu.memory_space<vmem>>, vector<32x96xf32>
    %c0_3 = arith.constant 0 : index
    %c0_4 = arith.constant 0 : index
    %c0_5 = arith.constant 0 : index
    %2 = vector.load %arg1[%c0_3, %c0_4, %c0_5] : memref<1x8x32xf32, #tpu.memory_space<vmem>>, vector<1x8x32xf32>
    %3 = vector.shape_cast %2 : vector<1x8x32xf32> to vector<8x32xf32>
    %c0_i32 = arith.constant 0 : i32
    %4 = arith.index_cast %c0_i32 : i32 to index
    %c0_6 = arith.constant 0 : index
    %c0_7 = arith.constant 0 : index
    %5 = vector.load %arg2[%4, %c0_6, %c0_7] : memref<4x8x32xf32, #tpu.memory_space<vmem>>, vector<1x8x32xf32>
    %6 = vector.shape_cast %5 : vector<1x8x32xf32> to vector<8x32xf32>
    %cst = arith.constant dense<0.000000e+00> : vector<8x96xf32>
    %7 = tpu.matmul %6, %0, %cst {dimension_numbers = #tpu.dot_dimension_numbers<[1], [0], [0], [1], [0, 0, 1, 1], [], []>} : vector<8x32xf32>, vector<32x96xf32>, vector<8x96xf32> -> vector<8x96xf32>
    %cst_8 = arith.constant dense<0.000000e+00> : vector<8x96xf32>
    %8 = tpu.matmul %3, %1, %cst_8 {dimension_numbers = #tpu.dot_dimension_numbers<[1], [0], [0], [1], [0, 0, 1, 1], [], []>} : vector<8x32xf32>, vector<32x96xf32>, vector<8x96xf32> -> vector<8x96xf32>
    %9 = vector.extract_strided_slice %7 {offsets = [0, 0], sizes = [8, 32], strides = [1, 1]} : vector<8x96xf32> to vector<8x32xf32>
    %10 = vector.extract_strided_slice %8 {offsets = [0, 0], sizes = [8, 32], strides = [1, 1]} : vector<8x96xf32> to vector<8x32xf32>
    %11 = arith.addf %9, %10 : vector<8x32xf32>
    %12 = arith.negf %11 : vector<8x32xf32>
    %13 = math.exp %12 : vector<8x32xf32>
    %cst_9 = arith.constant 1.000000e+00 : f32
    %14 = vector.broadcast %cst_9 : f32 to vector<8x32xf32>
    %15 = arith.addf %14, %13 : vector<8x32xf32>
    %16 = arith.divf %14, %15 : vector<8x32xf32>
    %17 = vector.extract_strided_slice %7 {offsets = [0, 32], sizes = [8, 32], strides = [1, 1]} : vector<8x96xf32> to vector<8x32xf32>
    %18 = vector.extract_strided_slice %8 {offsets = [0, 32], sizes = [8, 32], strides = [1, 1]} : vector<8x96xf32> to vector<8x32xf32>
    %19 = arith.addf %17, %18 : vector<8x32xf32>
    %20 = arith.negf %19 : vector<8x32xf32>
    %21 = math.exp %20 : vector<8x32xf32>
    %cst_10 = arith.constant 1.000000e+00 : f32
    %22 = vector.broadcast %cst_10 : f32 to vector<8x32xf32>
    %23 = arith.addf %22, %21 : vector<8x32xf32>
    %24 = arith.divf %22, %23 : vector<8x32xf32>
    %25 = vector.extract_strided_slice %7 {offsets = [0, 64], sizes = [8, 32], strides = [1, 1]} : vector<8x96xf32> to vector<8x32xf32>
    %26 = vector.extract_strided_slice %8 {offsets = [0, 64], sizes = [8, 32], strides = [1, 1]} : vector<8x96xf32> to vector<8x32xf32>
    %27 = arith.mulf %16, %26 : vector<8x32xf32>
    %28 = arith.addf %25, %27 : vector<8x32xf32>
    %29 = math.tanh %28 : vector<8x32xf32>
    %30 = arith.subf %3, %29 : vector<8x32xf32>
    %31 = arith.mulf %24, %30 : vector<8x32xf32>
    %32 = arith.addf %29, %31 : vector<8x32xf32>
    %c1_i32 = arith.constant 1 : i32
    %33 = arith.index_cast %c1_i32 : i32 to index
    %c0_11 = arith.constant 0 : index
    %c0_12 = arith.constant 0 : index
    %34 = vector.load %arg2[%33, %c0_11, %c0_12] : memref<4x8x32xf32, #tpu.memory_space<vmem>>, vector<1x8x32xf32>
    %35 = vector.shape_cast %34 : vector<1x8x32xf32> to vector<8x32xf32>
    %cst_13 = arith.constant dense<0.000000e+00> : vector<8x96xf32>
    %36 = tpu.matmul %35, %0, %cst_13 {dimension_numbers = #tpu.dot_dimension_numbers<[1], [0], [0], [1], [0, 0, 1, 1], [], []>} : vector<8x32xf32>, vector<32x96xf32>, vector<8x96xf32> -> vector<8x96xf32>
    %cst_14 = arith.constant dense<0.000000e+00> : vector<8x96xf32>
    %37 = tpu.matmul %32, %1, %cst_14 {dimension_numbers = #tpu.dot_dimension_numbers<[1], [0], [0], [1], [0, 0, 1, 1], [], []>} : vector<8x32xf32>, vector<32x96xf32>, vector<8x96xf32> -> vector<8x96xf32>
    %38 = vector.extract_strided_slice %36 {offsets = [0, 0], sizes = [8, 32], strides = [1, 1]} : vector<8x96xf32> to vector<8x32xf32>
    %39 = vector.extract_strided_slice %37 {offsets = [0, 0], sizes = [8, 32], strides = [1, 1]} : vector<8x96xf32> to vector<8x32xf32>
    %40 = arith.addf %38, %39 : vector<8x32xf32>
    %41 = arith.negf %40 : vector<8x32xf32>
    %42 = math.exp %41 : vector<8x32xf32>
    %cst_15 = arith.constant 1.000000e+00 : f32
    %43 = vector.broadcast %cst_15 : f32 to vector<8x32xf32>
    %44 = arith.addf %43, %42 : vector<8x32xf32>
    %45 = arith.divf %43, %44 : vector<8x32xf32>
    %46 = vector.extract_strided_slice %36 {offsets = [0, 32], sizes = [8, 32], strides = [1, 1]} : vector<8x96xf32> to vector<8x32xf32>
    %47 = vector.extract_strided_slice %37 {offsets = [0, 32], sizes = [8, 32], strides = [1, 1]} : vector<8x96xf32> to vector<8x32xf32>
    %48 = arith.addf %46, %47 : vector<8x32xf32>
    %49 = arith.negf %48 : vector<8x32xf32>
    %50 = math.exp %49 : vector<8x32xf32>
    %cst_16 = arith.constant 1.000000e+00 : f32
    %51 = vector.broadcast %cst_16 : f32 to vector<8x32xf32>
    %52 = arith.addf %51, %50 : vector<8x32xf32>
    %53 = arith.divf %51, %52 : vector<8x32xf32>
    %54 = vector.extract_strided_slice %36 {offsets = [0, 64], sizes = [8, 32], strides = [1, 1]} : vector<8x96xf32> to vector<8x32xf32>
    %55 = vector.extract_strided_slice %37 {offsets = [0, 64], sizes = [8, 32], strides = [1, 1]} : vector<8x96xf32> to vector<8x32xf32>
    %56 = arith.mulf %45, %55 : vector<8x32xf32>
    %57 = arith.addf %54, %56 : vector<8x32xf32>
    %58 = math.tanh %57 : vector<8x32xf32>
    %59 = arith.subf %32, %58 : vector<8x32xf32>
    %60 = arith.mulf %53, %59 : vector<8x32xf32>
    %61 = arith.addf %58, %60 : vector<8x32xf32>
    %c2_i32 = arith.constant 2 : i32
    %62 = arith.index_cast %c2_i32 : i32 to index
    %c0_17 = arith.constant 0 : index
    %c0_18 = arith.constant 0 : index
    %63 = vector.load %arg2[%62, %c0_17, %c0_18] : memref<4x8x32xf32, #tpu.memory_space<vmem>>, vector<1x8x32xf32>
    %64 = vector.shape_cast %63 : vector<1x8x32xf32> to vector<8x32xf32>
    %cst_19 = arith.constant dense<0.000000e+00> : vector<8x96xf32>
    %65 = tpu.matmul %64, %0, %cst_19 {dimension_numbers = #tpu.dot_dimension_numbers<[1], [0], [0], [1], [0, 0, 1, 1], [], []>} : vector<8x32xf32>, vector<32x96xf32>, vector<8x96xf32> -> vector<8x96xf32>
    %cst_20 = arith.constant dense<0.000000e+00> : vector<8x96xf32>
    %66 = tpu.matmul %61, %1, %cst_20 {dimension_numbers = #tpu.dot_dimension_numbers<[1], [0], [0], [1], [0, 0, 1, 1], [], []>} : vector<8x32xf32>, vector<32x96xf32>, vector<8x96xf32> -> vector<8x96xf32>
    %67 = vector.extract_strided_slice %65 {offsets = [0, 0], sizes = [8, 32], strides = [1, 1]} : vector<8x96xf32> to vector<8x32xf32>
    %68 = vector.extract_strided_slice %66 {offsets = [0, 0], sizes = [8, 32], strides = [1, 1]} : vector<8x96xf32> to vector<8x32xf32>
    %69 = arith.addf %67, %68 : vector<8x32xf32>
    %70 = arith.negf %69 : vector<8x32xf32>
    %71 = math.exp %70 : vector<8x32xf32>
    %cst_21 = arith.constant 1.000000e+00 : f32
    %72 = vector.broadcast %cst_21 : f32 to vector<8x32xf32>
    %73 = arith.addf %72, %71 : vector<8x32xf32>
    %74 = arith.divf %72, %73 : vector<8x32xf32>
    %75 = vector.extract_strided_slice %65 {offsets = [0, 32], sizes = [8, 32], strides = [1, 1]} : vector<8x96xf32> to vector<8x32xf32>
    %76 = vector.extract_strided_slice %66 {offsets = [0, 32], sizes = [8, 32], strides = [1, 1]} : vector<8x96xf32> to vector<8x32xf32>
    %77 = arith.addf %75, %76 : vector<8x32xf32>
    %78 = arith.negf %77 : vector<8x32xf32>
    %79 = math.exp %78 : vector<8x32xf32>
    %cst_22 = arith.constant 1.000000e+00 : f32
    %80 = vector.broadcast %cst_22 : f32 to vector<8x32xf32>
    %81 = arith.addf %80, %79 : vector<8x32xf32>
    %82 = arith.divf %80, %81 : vector<8x32xf32>
    %83 = vector.extract_strided_slice %65 {offsets = [0, 64], sizes = [8, 32], strides = [1, 1]} : vector<8x96xf32> to vector<8x32xf32>
    %84 = vector.extract_strided_slice %66 {offsets = [0, 64], sizes = [8, 32], strides = [1, 1]} : vector<8x96xf32> to vector<8x32xf32>
    %85 = arith.mulf %74, %84 : vector<8x32xf32>
    %86 = arith.addf %83, %85 : vector<8x32xf32>
    %87 = math.tanh %86 : vector<8x32xf32>
    %88 = arith.subf %61, %87 : vector<8x32xf32>
    %89 = arith.mulf %82, %88 : vector<8x32xf32>
    %90 = arith.addf %87, %89 : vector<8x32xf32>
    %c3_i32 = arith.constant 3 : i32
    %91 = arith.index_cast %c3_i32 : i32 to index
    %c0_23 = arith.constant 0 : index
    %c0_24 = arith.constant 0 : index
    %92 = vector.load %arg2[%91, %c0_23, %c0_24] : memref<4x8x32xf32, #tpu.memory_space<vmem>>, vector<1x8x32xf32>
    %93 = vector.shape_cast %92 : vector<1x8x32xf32> to vector<8x32xf32>
    %cst_25 = arith.constant dense<0.000000e+00> : vector<8x96xf32>
    %94 = tpu.matmul %93, %0, %cst_25 {dimension_numbers = #tpu.dot_dimension_numbers<[1], [0], [0], [1], [0, 0, 1, 1], [], []>} : vector<8x32xf32>, vector<32x96xf32>, vector<8x96xf32> -> vector<8x96xf32>
    %cst_26 = arith.constant dense<0.000000e+00> : vector<8x96xf32>
    %95 = tpu.matmul %90, %1, %cst_26 {dimension_numbers = #tpu.dot_dimension_numbers<[1], [0], [0], [1], [0, 0, 1, 1], [], []>} : vector<8x32xf32>, vector<32x96xf32>, vector<8x96xf32> -> vector<8x96xf32>
    %96 = vector.extract_strided_slice %94 {offsets = [0, 0], sizes = [8, 32], strides = [1, 1]} : vector<8x96xf32> to vector<8x32xf32>
    %97 = vector.extract_strided_slice %95 {offsets = [0, 0], sizes = [8, 32], strides = [1, 1]} : vector<8x96xf32> to vector<8x32xf32>
    %98 = arith.addf %96, %97 : vector<8x32xf32>
    %99 = arith.negf %98 : vector<8x32xf32>
    %100 = math.exp %99 : vector<8x32xf32>
    %cst_27 = arith.constant 1.000000e+00 : f32
    %101 = vector.broadcast %cst_27 : f32 to vector<8x32xf32>
    %102 = arith.addf %101, %100 : vector<8x32xf32>
    %103 = arith.divf %101, %102 : vector<8x32xf32>
    %104 = vector.extract_strided_slice %94 {offsets = [0, 32], sizes = [8, 32], strides = [1, 1]} : vector<8x96xf32> to vector<8x32xf32>
    %105 = vector.extract_strided_slice %95 {offsets = [0, 32], sizes = [8, 32], strides = [1, 1]} : vector<8x96xf32> to vector<8x32xf32>
    %106 = arith.addf %104, %105 : vector<8x32xf32>
    %107 = arith.negf %106 : vector<8x32xf32>
    %108 = math.exp %107 : vector<8x32xf32>
    %cst_28 = arith.constant 1.000000e+00 : f32
    %109 = vector.broadcast %cst_28 : f32 to vector<8x32xf32>
    %110 = arith.addf %109, %108 : vector<8x32xf32>
    %111 = arith.divf %109, %110 : vector<8x32xf32>
    %112 = vector.extract_strided_slice %94 {offsets = [0, 64], sizes = [8, 32], strides = [1, 1]} : vector<8x96xf32> to vector<8x32xf32>
    %113 = vector.extract_strided_slice %95 {offsets = [0, 64], sizes = [8, 32], strides = [1, 1]} : vector<8x96xf32> to vector<8x32xf32>
    %114 = arith.mulf %103, %113 : vector<8x32xf32>
    %115 = arith.addf %112, %114 : vector<8x32xf32>
    %116 = math.tanh %115 : vector<8x32xf32>
    %117 = arith.subf %90, %116 : vector<8x32xf32>
    %118 = arith.mulf %111, %117 : vector<8x32xf32>
    %119 = arith.addf %116, %118 : vector<8x32xf32>
    %c4_i32 = arith.constant 4 : i32
    %c0_29 = arith.constant 0 : index
    %c0_30 = arith.constant 0 : index
    %c0_31 = arith.constant 0 : index
    %120 = vector.load %arg5[%c0_29, %c0_30, %c0_31] : memref<1x8x32xf32, #tpu.memory_space<vmem>>, vector<1x8x32xf32>
    %121 = vector.shape_cast %120 : vector<1x8x32xf32> to vector<8x32xf32>
    %122 = vector.shape_cast %119 : vector<8x32xf32> to vector<1x8x32xf32>
    tpu.vector_store %arg5[%c0_29, %c0_30, %c0_31], %122 {strides = array<i32>} : memref<1x8x32xf32, #tpu.memory_space<vmem>>, vector<1x8x32xf32>,
    return
  }
  func.func @transform_0(%arg0: i32) -> (i32, i32, i32) {
    %c0_i32 = arith.constant 0 : i32
    %c0_i32_0 = arith.constant 0 : i32
    %c0_i32_1 = arith.constant 0 : i32
    %c0_i32_2 = arith.constant 0 : i32
    return %c0_i32, %c0_i32_0, %c0_i32_1 : i32, i32, i32
  }
  func.func @transform_1(%arg0: i32) -> (i32, i32, i32) {
    %c0_i32 = arith.constant 0 : i32
    %c0_i32_0 = arith.constant 0 : i32
    %c0_i32_1 = arith.constant 0 : i32
    %c0_i32_2 = arith.constant 0 : i32
    return %c0_i32, %c0_i32_0, %c0_i32_1 : i32, i32, i32
  }
  func.func @transform_2(%arg0: i32) -> (i32, i32) {
    %c0_i32 = arith.constant 0 : i32
    %c0_i32_0 = arith.constant 0 : i32
    %c0_i32_1 = arith.constant 0 : i32
    return %c0_i32, %c0_i32_0 : i32, i32
  }
  func.func @transform_3(%arg0: i32) -> (i32, i32) {
    %c0_i32 = arith.constant 0 : i32
    %c0_i32_0 = arith.constant 0 : i32
    %c0_i32_1 = arith.constant 0 : i32
    return %c0_i32, %c0_i32_0 : i32, i32
  }
  func.func @transform_4(%arg0: i32) -> (i32, i32, i32) {
    %c0_i32 = arith.constant 0 : i32
    %c0_i32_0 = arith.constant 0 : i32
    %c0_i32_1 = arith.constant 0 : i32
    %c0_i32_2 = arith.constant 0 : i32
    return %c0_i32, %c0_i32_0, %c0_i32_1 : i32, i32, i32
  }
}

</mosaic_0001>

<llo_original>
// kernel: tpu_custom_call.1
$region0: #{tpu_custom_call.1}
  #allocation0 [shape = 'u32[]', space=smem, size = 0x4, offset = 0x4, fixed_abs, tag = 'smem constant byte address 0x4 - core index']
  #allocation1 [shape = 'u32[144,128]{1,0:T(1,128)}', space=vmem, size = 0x12000, scoped, tag = 'internal scratch']
  %s0 = inlined_call_operand.hbm [shape: f32[1,8,32], index: 0, kind: input, shape index: {}]
  %s1 = inlined_call_operand.hbm [shape: f32[4,8,32], index: 1, kind: input, shape index: {}]
  %s2 = inlined_call_operand.hbm [shape: f32[32,96], index: 2, kind: input, shape index: {}]
  %s3 = inlined_call_operand.hbm [shape: f32[32,96], index: 3, kind: input, shape index: {}]
  %s4 = inlined_call_operand.hbm [shape: f32[1,8,32], index: 4, kind: output, shape index: {}]
  %s5 = sld [smem:[#allocation0]]
  $region42: #{tpu_custom_call.1} parent=0
    _
  %s7 = ssub.s32 1, %s5
  %s8 = scalar_select 0, %s7, %s5
  $region1: #{tpu_custom_call.1} parent=0
    #allocation2 [shape = 'u8[4096]{0}', space=vmem, size = 0x1000, scoped, tag = 'input window, operand 0, single buffered']
    #allocation3 [shape = 's32[1]{0}', space=sflag, size = 0x4, scoped, tag = 'scoped memory for tpu_custom_call.1']
    #allocation4 [shape = 's32[1]{0}', space=sflag, size = 0x4, scoped, tag = 'scoped memory for tpu_custom_call.1']
    #allocation5 [shape = 'u8[16384]{0}', space=vmem, size = 0x4000, scoped, tag = 'input window, operand 1, single buffered']
    #allocation6 [shape = 's32[1]{0}', space=sflag, size = 0x4, scoped, tag = 'scoped memory for tpu_custom_call.1']
    #allocation7 [shape = 'u8[16384]{0}', space=vmem, size = 0x4000, scoped, tag = 'input window, operand 2, single buffered']
    #allocation8 [shape = 'u8[16384]{0}', space=vmem, size = 0x4000, scoped, tag = 'input window, operand 3, single buffered']
    #allocation9 [shape = 's32[1]{0}', space=sflag, size = 0x4, scoped, tag = 'scoped memory for tpu_custom_call.1']
    #allocation10 [shape = 'u8[4096]{0}', space=vmem, size = 0x1000, scoped, tag = 'output window, operand 0, single buffered']
    %9 = vsyncpa [#allocation3], 0
    %10 = vsyncpa [#allocation6], 0
    %11 = vsyncpa [#allocation9], 0
    %12 = vsyncpa [#allocation4], 0
    // Predicated region
    $region2: #{tpu_custom_call.1} parent=1 // pred_check
      _
    $region3: #{tpu_custom_call.1} parent=1 // pred_check_branch
      %14 = sbr.rel (0) target = $region5
    $region4: #{tpu_custom_call.1} parent=1 // pred_region
      %s16 = ssub.s32 128, 128
      %17 = vsyncadd [#allocation3], %s16
      %s19 = sshll.u32 [#allocation2], 4
      %s20 = int_to_ptr.vmem [resolvable:$true] %s19
      %22 = dma.hbm_to_vmem [thread:$0]  %s0, 128, %s20, [#allocation3]
    $region5: #{tpu_custom_call.1} parent=1 // pred_fallthru
      _
    // Predicated region
    $region6: #{tpu_custom_call.1} parent=1 // pred_check
      _
    $region7: #{tpu_custom_call.1} parent=1 // pred_check_branch
      %24 = sbr.rel (0) target = $region9
    $region8: #{tpu_custom_call.1} parent=1 // pred_region
      %s26 = ssub.s32 512, 512
      %27 = vsyncadd [#allocation6], %s26
      %s28 = sshll.u32 [#allocation5], 4
      %s29 = int_to_ptr.vmem [resolvable:$true] %s28
      %34 = dma.hbm_to_vmem [thread:$0]  %s1, 512, %s29, [#allocation6], 128, 128, 8
    $region9: #{tpu_custom_call.1} parent=1 // pred_fallthru
      _
    // Predicated region
    $region10: #{tpu_custom_call.1} parent=1 // pred_check
      _
    $region11: #{tpu_custom_call.1} parent=1 // pred_check_branch
      %36 = sbr.rel (0) target = $region13
    $region12: #{tpu_custom_call.1} parent=1 // pred_region
      %s38 = ssub.s32 512, 512
      %39 = vsyncadd [#allocation6], %s38
      %s40 = sshll.u32 [#allocation7], 4
      %s41 = int_to_ptr.vmem [resolvable:$true] %s40
      %46 = dma.hbm_to_vmem [thread:$0]  %s2, 512, %s41, [#allocation6], 128, 128, 8
    $region13: #{tpu_custom_call.1} parent=1 // pred_fallthru
      _
    // Predicated region
    $region14: #{tpu_custom_call.1} parent=1 // pred_check
      _
    $region15: #{tpu_custom_call.1} parent=1 // pred_check_branch
      %48 = sbr.rel (0) target = $region17
    $region16: #{tpu_custom_call.1} parent=1 // pred_region
      %s50 = ssub.s32 512, 512
      %51 = vsyncadd [#allocation9], %s50
      %s52 = sshll.u32 [#allocation8], 4
      %s53 = int_to_ptr.vmem [resolvable:$true] %s52
      %58 = dma.hbm_to_vmem [thread:$0]  %s3, 512, %s53, [#allocation9], 128, 128, 8
    $region17: #{tpu_custom_call.1} parent=1 // pred_fallthru
      _
    // Predicated region
    $region18: #{tpu_custom_call.1} parent=1 // pred_check
      _
    $region19: #{tpu_custom_call.1} parent=1 // pred_check_branch
      %60 = sbr.rel (0) target = $region21
    $region20: #{tpu_custom_call.1} parent=1 // pred_region
      %61 = dma.done [#allocation3], 128
    $region21: #{tpu_custom_call.1} parent=1 // pred_fallthru
      _
    // Predicated region
    $region22: #{tpu_custom_call.1} parent=1 // pred_check
      _
    $region23: #{tpu_custom_call.1} parent=1 // pred_check_branch
      %63 = sbr.rel (0) target = $region25
    $region24: #{tpu_custom_call.1} parent=1 // pred_region
      %64 = dma.done [#allocation6], 512
    $region25: #{tpu_custom_call.1} parent=1 // pred_fallthru
      _
    // Predicated region
    $region26: #{tpu_custom_call.1} parent=1 // pred_check
      _
    $region27: #{tpu_custom_call.1} parent=1 // pred_check_branch
      %66 = sbr.rel (0) target = $region29
    $region28: #{tpu_custom_call.1} parent=1 // pred_region
      %67 = dma.done [#allocation6], 512
    $region29: #{tpu_custom_call.1} parent=1 // pred_fallthru
      _
    // Predicated region
    $region30: #{tpu_custom_call.1} parent=1 // pred_check
      _
    $region31: #{tpu_custom_call.1} parent=1 // pred_check_branch
      %69 = sbr.rel (0) target = $region33
    $region32: #{tpu_custom_call.1} parent=1 // pred_region
      %70 = dma.done [#allocation9], 512
    $region33: #{tpu_custom_call.1} parent=1 // pred_fallthru
      _
    %v71 = vld [vmem:[#allocation7] sm:$0xff]
    %v72 = vld [vmem:[#allocation7 + $0x8] sm:$0xff]
    %v73 = vld [vmem:[#allocation7 + $0x10] sm:$0xff]
    %v74 = vld [vmem:[#allocation7 + $0x18] sm:$0xff]
    %v75 = vld [vmem:[#allocation8] sm:$0xff]
    %v76 = vld [vmem:[#allocation8 + $0x8] sm:$0xff]
    %v77 = vld [vmem:[#allocation8 + $0x10] sm:$0xff]
    %v78 = vld [vmem:[#allocation8 + $0x18] sm:$0xff]
    %v79 = vld [vmem:[#allocation2] sm:$0xff]
    %v80 = vld [vmem:[#allocation5] sm:$0xff]
    %vm81 = vcmask 261120
    %v83 = vsel %vm81, %v80, 0
    %85 = vmatprep.subr.mxu0 0.0
    %86 = vmatpush1.msra.mxu0 0.0
    %87 = vmatprep.subr.mxu0 0.0
    %88 = vmatpush1.msra.mxu0 0.0
    %89 = vmatprep.subr.mxu0 0.0
    %90 = vmatpush1.msra.mxu0 0.0
    %91 = vmatprep.subr.mxu0 0.0
    %92 = vmatpush1.msra.mxu0 0.0
    %93 = vmatprep.subr.mxu0 0.0
    %94 = vmatpush1.msra.mxu0 0.0
    %95 = vmatprep.subr.mxu0 0.0
    %96 = vmatpush1.msra.mxu0 0.0
    %97 = vmatprep.subr.mxu0 0.0
    %98 = vmatpush1.msra.mxu0 0.0
    %99 = vmatprep.subr.mxu0 0.0
    %100 = vmatpush1.msra.mxu0 0.0
    %101 = vmatprep.subr.mxu0 0.0
    %102 = vmatpush1.msra.mxu0 0.0
    %103 = vmatprep.subr.mxu0 0.0
    %104 = vmatpush1.msra.mxu0 0.0
    %105 = vmatprep.subr.mxu0 0.0
    %106 = vmatpush1.msra.mxu0 0.0
    %107 = vmatprep.subr.mxu0 0.0
    %108 = vmatpush1.msra.mxu0 0.0
    %109 = vmatprep.subr.mxu0 0.0
    %110 = vmatpush1.msra.mxu0 %v74
    %111 = vmatprep.subr.mxu0 0.0
    %112 = vmatpush1.msra.mxu0 %v73
    %113 = vmatprep.subr.mxu0 0.0
    %114 = vmatpush1.msra.mxu0 %v72
    %115 = vmatprep.subr.mxu0 0.0
    %116 = vmatpush1.msra.mxu0 %v71
    %117 = vmatprep.subr.mxu0 0.0
    %118 = vmatpush2.msra.mxu0 0.0
    %119 = vmatprep.subr.mxu0 0.0
    %120 = vmatpush2.msra.mxu0 0.0
    %121 = vmatprep.subr.mxu0 0.0
    %122 = vmatpush2.msra.mxu0 0.0
    %123 = vmatprep.subr.mxu0 0.0
    %124 = vmatpush2.msra.mxu0 0.0
    %125 = vmatprep.subr.mxu0 0.0
    %126 = vmatpush2.msra.mxu0 0.0
    %127 = vmatprep.subr.mxu0 0.0
    %128 = vmatpush2.msra.mxu0 0.0
    %129 = vmatprep.subr.mxu0 0.0
    %130 = vmatpush2.msra.mxu0 0.0
    %131 = vmatprep.subr.mxu0 0.0
    %132 = vmatpush2.msra.mxu0 0.0
    %133 = vmatprep.subr.mxu0 0.0
    %134 = vmatpush2.msra.mxu0 0.0
    %135 = vmatprep.subr.mxu0 0.0
    %136 = vmatpush2.msra.mxu0 0.0
    %137 = vmatprep.subr.mxu0 0.0
    %138 = vmatpush2.msra.mxu0 0.0
    %139 = vmatprep.subr.mxu0 0.0
    %140 = vmatpush2.msra.mxu0 0.0
    %141 = vmatprep.subr.mxu0 0.0
    %142 = vmatpush2.msra.mxu0 0.0
    %143 = vmatprep.subr.mxu0 0.0
    %144 = vmatpush2.msra.mxu0 0.0
    %145 = vmatprep.subr.mxu0 0.0
    %146 = vmatpush2.msra.mxu0 0.0
    %147 = vmatprep.subr.mxu0 0.0
    %148 = vmatpush2.msra.mxu0 0.0
    %149 = vmatprep.mubr.f32.mxu0 0.0
    %150 = vmatmul.mubr.f32.gmra.mxu0 %v83
    %v151 = vpop.f32.mrf.mxu0
    %v152 = vadd.f32 0.0, %v151
    %v153 = vpop.f32.mrf.mxu0
    %154 = vdwg.mxu0
    %v156 = vsel %vm81, %v79, 0
    %158 = vmatprep.subr.mxu0 0.0
    %159 = vmatpush1.msra.mxu0 0.0
    %160 = vmatprep.subr.mxu0 0.0
    %161 = vmatpush1.msra.mxu0 0.0
    %162 = vmatprep.subr.mxu0 0.0
    %163 = vmatpush1.msra.mxu0 0.0
    %164 = vmatprep.subr.mxu0 0.0
    %165 = vmatpush1.msra.mxu0 0.0
    %166 = vmatprep.subr.mxu0 0.0
    %167 = vmatpush1.msra.mxu0 0.0
    %168 = vmatprep.subr.mxu0 0.0
    %169 = vmatpush1.msra.mxu0 0.0
    %170 = vmatprep.subr.mxu0 0.0
    %171 = vmatpush1.msra.mxu0 0.0
    %172 = vmatprep.subr.mxu0 0.0
    %173 = vmatpush1.msra.mxu0 0.0
    %174 = vmatprep.subr.mxu0 0.0
    %175 = vmatpush1.msra.mxu0 0.0
    %176 = vmatprep.subr.mxu0 0.0
    %177 = vmatpush1.msra.mxu0 0.0
    %178 = vmatprep.subr.mxu0 0.0
    %179 = vmatpush1.msra.mxu0 0.0
    %180 = vmatprep.subr.mxu0 0.0
    %181 = vmatpush1.msra.mxu0 0.0
    %182 = vmatprep.subr.mxu0 0.0
    %183 = vmatpush1.msra.mxu0 %v78
    %184 = vmatprep.subr.mxu0 0.0
    %185 = vmatpush1.msra.mxu0 %v77
    %186 = vmatprep.subr.mxu0 0.0
    %187 = vmatpush1.msra.mxu0 %v76
    %188 = vmatprep.subr.mxu0 0.0
    %189 = vmatpush1.msra.mxu0 %v75
    %190 = vmatprep.subr.mxu0 0.0
    %191 = vmatpush2.msra.mxu0 0.0
    %192 = vmatprep.subr.mxu0 0.0
    %193 = vmatpush2.msra.mxu0 0.0
    %194 = vmatprep.subr.mxu0 0.0
    %195 = vmatpush2.msra.mxu0 0.0
    %196 = vmatprep.subr.mxu0 0.0
    %197 = vmatpush2.msra.mxu0 0.0
    %198 = vmatprep.subr.mxu0 0.0
    %199 = vmatpush2.msra.mxu0 0.0
    %200 = vmatprep.subr.mxu0 0.0
    %201 = vmatpush2.msra.mxu0 0.0
    %202 = vmatprep.subr.mxu0 0.0
    %203 = vmatpush2.msra.mxu0 0.0
    %204 = vmatprep.subr.mxu0 0.0
    %205 = vmatpush2.msra.mxu0 0.0
    %206 = vmatprep.subr.mxu0 0.0
    %207 = vmatpush2.msra.mxu0 0.0
    %208 = vmatprep.subr.mxu0 0.0
    %209 = vmatpush2.msra.mxu0 0.0
    %210 = vmatprep.subr.mxu0 0.0
    %211 = vmatpush2.msra.mxu0 0.0
    %212 = vmatprep.subr.mxu0 0.0
    %213 = vmatpush2.msra.mxu0 0.0
    %214 = vmatprep.subr.mxu0 0.0
    %215 = vmatpush2.msra.mxu0 0.0
    %216 = vmatprep.subr.mxu0 0.0
    %217 = vmatpush2.msra.mxu0 0.0
    %218 = vmatprep.subr.mxu0 0.0
    %219 = vmatpush2.msra.mxu0 0.0
    %220 = vmatprep.subr.mxu0 0.0
    %221 = vmatpush2.msra.mxu0 0.0
    %222 = vmatprep.mubr.f32.mxu0 0.0
    %223 = vmatmul.mubr.f32.gmra.mxu0 %v156
    %v224 = vpop.f32.mrf.mxu0
    %v225 = vadd.f32 0.0, %v224
    %v226 = vpop.f32.mrf.mxu0
    %227 = vdwg.mxu0
    %v228 = vadd.f32 %v152, %v225
    %v229 = vxor.u32 %v228, 2147483648
    %v230 = vmul.f32 %v229, 1.442695
    %v231 = vpow.pop %v230
    %v232 = vadd.f32 %v231, 1.0
    %v233 = vrcp.pop %v232
    %v234 = vmul.f32 1.0, %v233
    %236 = vrot.lane.b32.xlu0 %v225, 64
    %v237 = vpop.permute.xlu0 %236
    %v239 = vmul.f32 %v234, %v237
    %241 = vrot.lane.b32.xlu0 %v239, 64
    %v242 = vpop.permute.xlu0 %241
    %v244 = vadd.f32 %v152, %v242
    %v245 = vtanh.pop %v244
    %247 = vrot.lane.b32.xlu0 %v245, 64
    %v248 = vpop.permute.xlu0 %247
    %v250 = vsub.f32 %v79, %v248
    %252 = vrot.lane.b32.xlu0 %v250, 32
    %v253 = vpop.permute.xlu0 %252
    %v255 = vmul.f32 %v234, %v253
    %257 = vrot.lane.b32.xlu0 %v255, 32
    %v258 = vpop.permute.xlu0 %257
    %v260 = vadd.f32 %v245, %v258
    %s261 = scalar_lea.vmem [#allocation5], 8
    %v262 = vld [vmem:[%s261] sm:$0xff]
    %v264 = vsel %vm81, %v262, 0
    %266 = vmatprep.subr.mxu0 0.0
    %267 = vmatpush1.msra.mxu0 0.0
    %268 = vmatprep.subr.mxu0 0.0
    %269 = vmatpush1.msra.mxu0 0.0
    %270 = vmatprep.subr.mxu0 0.0
    %271 = vmatpush1.msra.mxu0 0.0
    %272 = vmatprep.subr.mxu0 0.0
    %273 = vmatpush1.msra.mxu0 0.0
    %274 = vmatprep.subr.mxu0 0.0
    %275 = vmatpush1.msra.mxu0 0.0
    %276 = vmatprep.subr.mxu0 0.0
    %277 = vmatpush1.msra.mxu0 0.0
    %278 = vmatprep.subr.mxu0 0.0
    %279 = vmatpush1.msra.mxu0 0.0
    %280 = vmatprep.subr.mxu0 0.0
    %281 = vmatpush1.msra.mxu0 0.0
    %282 = vmatprep.subr.mxu0 0.0
    %283 = vmatpush1.msra.mxu0 0.0
    %284 = vmatprep.subr.mxu0 0.0
    %285 = vmatpush1.msra.mxu0 0.0
    %286 = vmatprep.subr.mxu0 0.0
    %287 = vmatpush1.msra.mxu0 0.0
    %288 = vmatprep.subr.mxu0 0.0
    %289 = vmatpush1.msra.mxu0 0.0
    %290 = vmatprep.subr.mxu0 0.0
    %291 = vmatpush1.msra.mxu0 %v74
    %292 = vmatprep.subr.mxu0 0.0
    %293 = vmatpush1.msra.mxu0 %v73
    %294 = vmatprep.subr.mxu0 0.0
    %295 = vmatpush1.msra.mxu0 %v72
    %296 = vmatprep.subr.mxu0 0.0
    %297 = vmatpush1.msra.mxu0 %v71
    %298 = vmatprep.subr.mxu0 0.0
    %299 = vmatpush2.msra.mxu0 0.0
    %300 = vmatprep.subr.mxu0 0.0
    %301 = vmatpush2.msra.mxu0 0.0
    %302 = vmatprep.subr.mxu0 0.0
    %303 = vmatpush2.msra.mxu0 0.0
    %304 = vmatprep.subr.mxu0 0.0
    %305 = vmatpush2.msra.mxu0 0.0
    %306 = vmatprep.subr.mxu0 0.0
    %307 = vmatpush2.msra.mxu0 0.0
    %308 = vmatprep.subr.mxu0 0.0
    %309 = vmatpush2.msra.mxu0 0.0
    %310 = vmatprep.subr.mxu0 0.0
    %311 = vmatpush2.msra.mxu0 0.0
    %312 = vmatprep.subr.mxu0 0.0
    %313 = vmatpush2.msra.mxu0 0.0
    %314 = vmatprep.subr.mxu0 0.0
    %315 = vmatpush2.msra.mxu0 0.0
    %316 = vmatprep.subr.mxu0 0.0
    %317 = vmatpush2.msra.mxu0 0.0
    %318 = vmatprep.subr.mxu0 0.0
    %319 = vmatpush2.msra.mxu0 0.0
    %320 = vmatprep.subr.mxu0 0.0
    %321 = vmatpush2.msra.mxu0 0.0
    %322 = vmatprep.subr.mxu0 0.0
    %323 = vmatpush2.msra.mxu0 0.0
    %324 = vmatprep.subr.mxu0 0.0
    %325 = vmatpush2.msra.mxu0 0.0
    %326 = vmatprep.subr.mxu0 0.0
    %327 = vmatpush2.msra.mxu0 0.0
    %328 = vmatprep.subr.mxu0 0.0
    %329 = vmatpush2.msra.mxu0 0.0
    %330 = vmatprep.mubr.f32.mxu0 0.0
    %331 = vmatmul.mubr.f32.gmra.mxu0 %v264
    %v332 = vpop.f32.mrf.mxu0
    %v333 = vadd.f32 0.0, %v332
    %v334 = vpop.f32.mrf.mxu0
    %335 = vdwg.mxu0
    %337 = vrot.lane.b32.xlu0 %v260, 64
    %v338 = vpop.permute.xlu0 %337
    %v339 = vsel %vm81, %v338, 0
    %341 = vmatprep.subr.mxu0 0.0
    %342 = vmatpush1.msra.mxu0 0.0
    %343 = vmatprep.subr.mxu0 0.0
    %344 = vmatpush1.msra.mxu0 0.0
    %345 = vmatprep.subr.mxu0 0.0
    %346 = vmatpush1.msra.mxu0 0.0
    %347 = vmatprep.subr.mxu0 0.0
    %348 = vmatpush1.msra.mxu0 0.0
    %349 = vmatprep.subr.mxu0 0.0
    %350 = vmatpush1.msra.mxu0 0.0
    %351 = vmatprep.subr.mxu0 0.0
    %352 = vmatpush1.msra.mxu0 0.0
    %353 = vmatprep.subr.mxu0 0.0
    %354 = vmatpush1.msra.mxu0 0.0
    %355 = vmatprep.subr.mxu0 0.0
    %356 = vmatpush1.msra.mxu0 0.0
    %357 = vmatprep.subr.mxu0 0.0
    %358 = vmatpush1.msra.mxu0 0.0
    %359 = vmatprep.subr.mxu0 0.0
    %360 = vmatpush1.msra.mxu0 0.0
    %361 = vmatprep.subr.mxu0 0.0
    %362 = vmatpush1.msra.mxu0 0.0
    %363 = vmatprep.subr.mxu0 0.0
    %364 = vmatpush1.msra.mxu0 0.0
    %365 = vmatprep.subr.mxu0 0.0
    %366 = vmatpush1.msra.mxu0 %v78
    %367 = vmatprep.subr.mxu0 0.0
    %368 = vmatpush1.msra.mxu0 %v77
    %369 = vmatprep.subr.mxu0 0.0
    %370 = vmatpush1.msra.mxu0 %v76
    %371 = vmatprep.subr.mxu0 0.0
    %372 = vmatpush1.msra.mxu0 %v75
    %373 = vmatprep.subr.mxu0 0.0
    %374 = vmatpush2.msra.mxu0 0.0
    %375 = vmatprep.subr.mxu0 0.0
    %376 = vmatpush2.msra.mxu0 0.0
    %377 = vmatprep.subr.mxu0 0.0
    %378 = vmatpush2.msra.mxu0 0.0
    %379 = vmatprep.subr.mxu0 0.0
    %380 = vmatpush2.msra.mxu0 0.0
    %381 = vmatprep.subr.mxu0 0.0
    %382 = vmatpush2.msra.mxu0 0.0
    %383 = vmatprep.subr.mxu0 0.0
    %384 = vmatpush2.msra.mxu0 0.0
    %385 = vmatprep.subr.mxu0 0.0
    %386 = vmatpush2.msra.mxu0 0.0
    %387 = vmatprep.subr.mxu0 0.0
    %388 = vmatpush2.msra.mxu0 0.0
    %389 = vmatprep.subr.mxu0 0.0
    %390 = vmatpush2.msra.mxu0 0.0
    %391 = vmatprep.subr.mxu0 0.0
    %392 = vmatpush2.msra.mxu0 0.0
    %393 = vmatprep.subr.mxu0 0.0
    %394 = vmatpush2.msra.mxu0 0.0
    %395 = vmatprep.subr.mxu0 0.0
    %396 = vmatpush2.msra.mxu0 0.0
    %397 = vmatprep.subr.mxu0 0.0
    %398 = vmatpush2.msra.mxu0 0.0
    %399 = vmatprep.subr.mxu0 0.0
    %400 = vmatpush2.msra.mxu0 0.0
    %401 = vmatprep.subr.mxu0 0.0
    %402 = vmatpush2.msra.mxu0 0.0
    %403 = vmatprep.subr.mxu0 0.0
    %404 = vmatpush2.msra.mxu0 0.0
    %405 = vmatprep.mubr.f32.mxu0 0.0
    %406 = vmatmul.mubr.f32.gmra.mxu0 %v339
    %v407 = vpop.f32.mrf.mxu0
    %v408 = vadd.f32 0.0, %v407
    %v409 = vpop.f32.mrf.mxu0
    %410 = vdwg.mxu0
    %v411 = vadd.f32 %v333, %v408
    %v412 = vxor.u32 %v411, 2147483648
    %v413 = vmul.f32 %v412, 1.442695
    %v414 = vpow.pop %v413
    %v415 = vadd.f32 %v414, 1.0
    %v416 = vrcp.pop %v415
    %v417 = vmul.f32 1.0, %v416
    %419 = vrot.lane.b32.xlu0 %v408, 64
    %v420 = vpop.permute.xlu0 %419
    %v422 = vmul.f32 %v417, %v420
    %424 = vrot.lane.b32.xlu0 %v422, 64
    %v425 = vpop.permute.xlu0 %424
    %v427 = vadd.f32 %v333, %v425
    %v428 = vtanh.pop %v427
    %v429 = vsub.f32 %v260, %v428
    %431 = vrot.lane.b32.xlu0 %v429, 96
    %v432 = vpop.permute.xlu0 %431
    %v434 = vmul.f32 %v417, %v432
    %436 = vrot.lane.b32.xlu0 %v434, 32
    %v437 = vpop.permute.xlu0 %436
    %v439 = vadd.f32 %v428, %v437
    %s440 = scalar_lea.vmem [#allocation5], 16
    %v441 = vld [vmem:[%s440] sm:$0xff]
    %v443 = vsel %vm81, %v441, 0
    %445 = vmatprep.subr.mxu0 0.0
    %446 = vmatpush1.msra.mxu0 0.0
    %447 = vmatprep.subr.mxu0 0.0
    %448 = vmatpush1.msra.mxu0 0.0
    %449 = vmatprep.subr.mxu0 0.0
    %450 = vmatpush1.msra.mxu0 0.0
    %451 = vmatprep.subr.mxu0 0.0
    %452 = vmatpush1.msra.mxu0 0.0
    %453 = vmatprep.subr.mxu0 0.0
    %454 = vmatpush1.msra.mxu0 0.0
    %455 = vmatprep.subr.mxu0 0.0
    %456 = vmatpush1.msra.mxu0 0.0
    %457 = vmatprep.subr.mxu0 0.0
    %458 = vmatpush1.msra.mxu0 0.0
    %459 = vmatprep.subr.mxu0 0.0
    %460 = vmatpush1.msra.mxu0 0.0
    %461 = vmatprep.subr.mxu0 0.0
    %462 = vmatpush1.msra.mxu0 0.0
    %463 = vmatprep.subr.mxu0 0.0
    %464 = vmatpush1.msra.mxu0 0.0
    %465 = vmatprep.subr.mxu0 0.0
    %466 = vmatpush1.msra.mxu0 0.0
    %467 = vmatprep.subr.mxu0 0.0
    %468 = vmatpush1.msra.mxu0 0.0
    %469 = vmatprep.subr.mxu0 0.0
    %470 = vmatpush1.msra.mxu0 %v74
    %471 = vmatprep.subr.mxu0 0.0
    %472 = vmatpush1.msra.mxu0 %v73
    %473 = vmatprep.subr.mxu0 0.0
    %474 = vmatpush1.msra.mxu0 %v72
    %475 = vmatprep.subr.mxu0 0.0
    %476 = vmatpush1.msra.mxu0 %v71
    %477 = vmatprep.subr.mxu0 0.0
    %478 = vmatpush2.msra.mxu0 0.0
    %479 = vmatprep.subr.mxu0 0.0
    %480 = vmatpush2.msra.mxu0 0.0
    %481 = vmatprep.subr.mxu0 0.0
    %482 = vmatpush2.msra.mxu0 0.0
    %483 = vmatprep.subr.mxu0 0.0
    %484 = vmatpush2.msra.mxu0 0.0
    %485 = vmatprep.subr.mxu0 0.0
    %486 = vmatpush2.msra.mxu0 0.0
    %487 = vmatprep.subr.mxu0 0.0
    %488 = vmatpush2.msra.mxu0 0.0
    %489 = vmatprep.subr.mxu0 0.0
    %490 = vmatpush2.msra.mxu0 0.0
    %491 = vmatprep.subr.mxu0 0.0
    %492 = vmatpush2.msra.mxu0 0.0
    %493 = vmatprep.subr.mxu0 0.0
    %494 = vmatpush2.msra.mxu0 0.0
    %495 = vmatprep.subr.mxu0 0.0
    %496 = vmatpush2.msra.mxu0 0.0
    %497 = vmatprep.subr.mxu0 0.0
    %498 = vmatpush2.msra.mxu0 0.0
    %499 = vmatprep.subr.mxu0 0.0
    %500 = vmatpush2.msra.mxu0 0.0
    %501 = vmatprep.subr.mxu0 0.0
    %502 = vmatpush2.msra.mxu0 0.0
    %503 = vmatprep.subr.mxu0 0.0
    %504 = vmatpush2.msra.mxu0 0.0
    %505 = vmatprep.subr.mxu0 0.0
    %506 = vmatpush2.msra.mxu0 0.0
    %507 = vmatprep.subr.mxu0 0.0
    %508 = vmatpush2.msra.mxu0 0.0
    %509 = vmatprep.mubr.f32.mxu0 0.0
    %510 = vmatmul.mubr.f32.gmra.mxu0 %v443
    %v511 = vpop.f32.mrf.mxu0
    %v512 = vadd.f32 0.0, %v511
    %v513 = vpop.f32.mrf.mxu0
    %514 = vdwg.mxu0
    %516 = vrot.lane.b32.xlu0 %v439, 64
    %v517 = vpop.permute.xlu0 %516
    %v518 = vsel %vm81, %v517, 0
    %520 = vmatprep.subr.mxu0 0.0
    %521 = vmatpush1.msra.mxu0 0.0
    %522 = vmatprep.subr.mxu0 0.0
    %523 = vmatpush1.msra.mxu0 0.0
    %524 = vmatprep.subr.mxu0 0.0
    %525 = vmatpush1.msra.mxu0 0.0
    %526 = vmatprep.subr.mxu0 0.0
    %527 = vmatpush1.msra.mxu0 0.0
    %528 = vmatprep.subr.mxu0 0.0
    %529 = vmatpush1.msra.mxu0 0.0
    %530 = vmatprep.subr.mxu0 0.0
    %531 = vmatpush1.msra.mxu0 0.0
    %532 = vmatprep.subr.mxu0 0.0
    %533 = vmatpush1.msra.mxu0 0.0
    %534 = vmatprep.subr.mxu0 0.0
    %535 = vmatpush1.msra.mxu0 0.0
    %536 = vmatprep.subr.mxu0 0.0
    %537 = vmatpush1.msra.mxu0 0.0
    %538 = vmatprep.subr.mxu0 0.0
    %539 = vmatpush1.msra.mxu0 0.0
    %540 = vmatprep.subr.mxu0 0.0
    %541 = vmatpush1.msra.mxu0 0.0
    %542 = vmatprep.subr.mxu0 0.0
    %543 = vmatpush1.msra.mxu0 0.0
    %544 = vmatprep.subr.mxu0 0.0
    %545 = vmatpush1.msra.mxu0 %v78
    %546 = vmatprep.subr.mxu0 0.0
    %547 = vmatpush1.msra.mxu0 %v77
    %548 = vmatprep.subr.mxu0 0.0
    %549 = vmatpush1.msra.mxu0 %v76
    %550 = vmatprep.subr.mxu0 0.0
    %551 = vmatpush1.msra.mxu0 %v75
    %552 = vmatprep.subr.mxu0 0.0
    %553 = vmatpush2.msra.mxu0 0.0
    %554 = vmatprep.subr.mxu0 0.0
    %555 = vmatpush2.msra.mxu0 0.0
    %556 = vmatprep.subr.mxu0 0.0
    %557 = vmatpush2.msra.mxu0 0.0
    %558 = vmatprep.subr.mxu0 0.0
    %559 = vmatpush2.msra.mxu0 0.0
    %560 = vmatprep.subr.mxu0 0.0
    %561 = vmatpush2.msra.mxu0 0.0
    %562 = vmatprep.subr.mxu0 0.0
    %563 = vmatpush2.msra.mxu0 0.0
    %564 = vmatprep.subr.mxu0 0.0
    %565 = vmatpush2.msra.mxu0 0.0
    %566 = vmatprep.subr.mxu0 0.0
    %567 = vmatpush2.msra.mxu0 0.0
    %568 = vmatprep.subr.mxu0 0.0
    %569 = vmatpush2.msra.mxu0 0.0
    %570 = vmatprep.subr.mxu0 0.0
    %571 = vmatpush2.msra.mxu0 0.0
    %572 = vmatprep.subr.mxu0 0.0
    %573 = vmatpush2.msra.mxu0 0.0
    %574 = vmatprep.subr.mxu0 0.0
    %575 = vmatpush2.msra.mxu0 0.0
    %576 = vmatprep.subr.mxu0 0.0
    %577 = vmatpush2.msra.mxu0 0.0
    %578 = vmatprep.subr.mxu0 0.0
    %579 = vmatpush2.msra.mxu0 0.0
    %580 = vmatprep.subr.mxu0 0.0
    %581 = vmatpush2.msra.mxu0 0.0
    %582 = vmatprep.subr.mxu0 0.0
    %583 = vmatpush2.msra.mxu0 0.0
    %584 = vmatprep.mubr.f32.mxu0 0.0
    %585 = vmatmul.mubr.f32.gmra.mxu0 %v518
    %v586 = vpop.f32.mrf.mxu0
    %v587 = vadd.f32 0.0, %v586
    %v588 = vpop.f32.mrf.mxu0
    %589 = vdwg.mxu0
    %v590 = vadd.f32 %v512, %v587
    %v591 = vxor.u32 %v590, 2147483648
    %v592 = vmul.f32 %v591, 1.442695
    %v593 = vpow.pop %v592
    %v594 = vadd.f32 %v593, 1.0
    %v595 = vrcp.pop %v594
    %v596 = vmul.f32 1.0, %v595
    %598 = vrot.lane.b32.xlu0 %v587, 64
    %v599 = vpop.permute.xlu0 %598
    %v601 = vmul.f32 %v596, %v599
    %603 = vrot.lane.b32.xlu0 %v601, 64
    %v604 = vpop.permute.xlu0 %603
    %v606 = vadd.f32 %v512, %v604
    %v607 = vtanh.pop %v606
    %v608 = vsub.f32 %v439, %v607
    %610 = vrot.lane.b32.xlu0 %v608, 96
    %v611 = vpop.permute.xlu0 %610
    %v613 = vmul.f32 %v596, %v611
    %615 = vrot.lane.b32.xlu0 %v613, 32
    %v616 = vpop.permute.xlu0 %615
    %v618 = vadd.f32 %v607, %v616
    %s619 = scalar_lea.vmem [#allocation5], 24
    %v620 = vld [vmem:[%s619] sm:$0xff]
    %v622 = vsel %vm81, %v620, 0
    %624 = vmatprep.subr.mxu0 0.0
    %625 = vmatpush1.msra.mxu0 0.0
    %626 = vmatprep.subr.mxu0 0.0
    %627 = vmatpush1.msra.mxu0 0.0
    %628 = vmatprep.subr.mxu0 0.0
    %629 = vmatpush1.msra.mxu0 0.0
    %630 = vmatprep.subr.mxu0 0.0
    %631 = vmatpush1.msra.mxu0 0.0
    %632 = vmatprep.subr.mxu0 0.0
    %633 = vmatpush1.msra.mxu0 0.0
    %634 = vmatprep.subr.mxu0 0.0
    %635 = vmatpush1.msra.mxu0 0.0
    %636 = vmatprep.subr.mxu0 0.0
    %637 = vmatpush1.msra.mxu0 0.0
    %638 = vmatprep.subr.mxu0 0.0
    %639 = vmatpush1.msra.mxu0 0.0
    %640 = vmatprep.subr.mxu0 0.0
    %641 = vmatpush1.msra.mxu0 0.0
    %642 = vmatprep.subr.mxu0 0.0
    %643 = vmatpush1.msra.mxu0 0.0
    %644 = vmatprep.subr.mxu0 0.0
    %645 = vmatpush1.msra.mxu0 0.0
    %646 = vmatprep.subr.mxu0 0.0
    %647 = vmatpush1.msra.mxu0 0.0
    %648 = vmatprep.subr.mxu0 0.0
    %649 = vmatpush1.msra.mxu0 %v74
    %650 = vmatprep.subr.mxu0 0.0
    %651 = vmatpush1.msra.mxu0 %v73
    %652 = vmatprep.subr.mxu0 0.0
    %653 = vmatpush1.msra.mxu0 %v72
    %654 = vmatprep.subr.mxu0 0.0
    %655 = vmatpush1.msra.mxu0 %v71
    %656 = vmatprep.subr.mxu0 0.0
    %657 = vmatpush2.msra.mxu0 0.0
    %658 = vmatprep.subr.mxu0 0.0
    %659 = vmatpush2.msra.mxu0 0.0
    %660 = vmatprep.subr.mxu0 0.0
    %661 = vmatpush2.msra.mxu0 0.0
    %662 = vmatprep.subr.mxu0 0.0
    %663 = vmatpush2.msra.mxu0 0.0
    %664 = vmatprep.subr.mxu0 0.0
    %665 = vmatpush2.msra.mxu0 0.0
    %666 = vmatprep.subr.mxu0 0.0
    %667 = vmatpush2.msra.mxu0 0.0
    %668 = vmatprep.subr.mxu0 0.0
    %669 = vmatpush2.msra.mxu0 0.0
    %670 = vmatprep.subr.mxu0 0.0
    %671 = vmatpush2.msra.mxu0 0.0
    %672 = vmatprep.subr.mxu0 0.0
    %673 = vmatpush2.msra.mxu0 0.0
    %674 = vmatprep.subr.mxu0 0.0
    %675 = vmatpush2.msra.mxu0 0.0
    %676 = vmatprep.subr.mxu0 0.0
    %677 = vmatpush2.msra.mxu0 0.0
    %678 = vmatprep.subr.mxu0 0.0
    %679 = vmatpush2.msra.mxu0 0.0
    %680 = vmatprep.subr.mxu0 0.0
    %681 = vmatpush2.msra.mxu0 0.0
    %682 = vmatprep.subr.mxu0 0.0
    %683 = vmatpush2.msra.mxu0 0.0
    %684 = vmatprep.subr.mxu0 0.0
    %685 = vmatpush2.msra.mxu0 0.0
    %686 = vmatprep.subr.mxu0 0.0
    %687 = vmatpush2.msra.mxu0 0.0
    %688 = vmatprep.mubr.f32.mxu0 0.0
    %689 = vmatmul.mubr.f32.gmra.mxu0 %v622
    %v690 = vpop.f32.mrf.mxu0
    %v691 = vadd.f32 0.0, %v690
    %v692 = vpop.f32.mrf.mxu0
    %693 = vdwg.mxu0
    %695 = vrot.lane.b32.xlu0 %v618, 64
    %v696 = vpop.permute.xlu0 %695
    %v697 = vsel %vm81, %v696, 0
    %699 = vmatprep.subr.mxu0 0.0
    %700 = vmatpush1.msra.mxu0 0.0
    %701 = vmatprep.subr.mxu0 0.0
    %702 = vmatpush1.msra.mxu0 0.0
    %703 = vmatprep.subr.mxu0 0.0
    %704 = vmatpush1.msra.mxu0 0.0
    %705 = vmatprep.subr.mxu0 0.0
    %706 = vmatpush1.msra.mxu0 0.0
    %707 = vmatprep.subr.mxu0 0.0
    %708 = vmatpush1.msra.mxu0 0.0
    %709 = vmatprep.subr.mxu0 0.0
    %710 = vmatpush1.msra.mxu0 0.0
    %711 = vmatprep.subr.mxu0 0.0
    %712 = vmatpush1.msra.mxu0 0.0
    %713 = vmatprep.subr.mxu0 0.0
    %714 = vmatpush1.msra.mxu0 0.0
    %715 = vmatprep.subr.mxu0 0.0
    %716 = vmatpush1.msra.mxu0 0.0
    %717 = vmatprep.subr.mxu0 0.0
    %718 = vmatpush1.msra.mxu0 0.0
    %719 = vmatprep.subr.mxu0 0.0
    %720 = vmatpush1.msra.mxu0 0.0
    %721 = vmatprep.subr.mxu0 0.0
    %722 = vmatpush1.msra.mxu0 0.0
    %723 = vmatprep.subr.mxu0 0.0
    %724 = vmatpush1.msra.mxu0 %v78
    %725 = vmatprep.subr.mxu0 0.0
    %726 = vmatpush1.msra.mxu0 %v77
    %727 = vmatprep.subr.mxu0 0.0
    %728 = vmatpush1.msra.mxu0 %v76
    %729 = vmatprep.subr.mxu0 0.0
    %730 = vmatpush1.msra.mxu0 %v75
    %731 = vmatprep.subr.mxu0 0.0
    %732 = vmatpush2.msra.mxu0 0.0
    %733 = vmatprep.subr.mxu0 0.0
    %734 = vmatpush2.msra.mxu0 0.0
    %735 = vmatprep.subr.mxu0 0.0
    %736 = vmatpush2.msra.mxu0 0.0
    %737 = vmatprep.subr.mxu0 0.0
    %738 = vmatpush2.msra.mxu0 0.0
    %739 = vmatprep.subr.mxu0 0.0
    %740 = vmatpush2.msra.mxu0 0.0
    %741 = vmatprep.subr.mxu0 0.0
    %742 = vmatpush2.msra.mxu0 0.0
    %743 = vmatprep.subr.mxu0 0.0
    %744 = vmatpush2.msra.mxu0 0.0
    %745 = vmatprep.subr.mxu0 0.0
    %746 = vmatpush2.msra.mxu0 0.0
    %747 = vmatprep.subr.mxu0 0.0
    %748 = vmatpush2.msra.mxu0 0.0
    %749 = vmatprep.subr.mxu0 0.0
    %750 = vmatpush2.msra.mxu0 0.0
    %751 = vmatprep.subr.mxu0 0.0
    %752 = vmatpush2.msra.mxu0 0.0
    %753 = vmatprep.subr.mxu0 0.0
    %754 = vmatpush2.msra.mxu0 0.0
    %755 = vmatprep.subr.mxu0 0.0
    %756 = vmatpush2.msra.mxu0 0.0
    %757 = vmatprep.subr.mxu0 0.0
    %758 = vmatpush2.msra.mxu0 0.0
    %759 = vmatprep.subr.mxu0 0.0
    %760 = vmatpush2.msra.mxu0 0.0
    %761 = vmatprep.subr.mxu0 0.0
    %762 = vmatpush2.msra.mxu0 0.0
    %763 = vmatprep.mubr.f32.mxu0 0.0
    %764 = vmatmul.mubr.f32.gmra.mxu0 %v697
    %v765 = vpop.f32.mrf.mxu0
    %v766 = vadd.f32 0.0, %v765
    %v767 = vpop.f32.mrf.mxu0
    %768 = vdwg.mxu0
    %v769 = vadd.f32 %v691, %v766
    %v770 = vxor.u32 %v769, 2147483648
    %v771 = vmul.f32 %v770, 1.442695
    %v772 = vpow.pop %v771
    %v773 = vadd.f32 %v772, 1.0
    %v774 = vrcp.pop %v773
    %v775 = vmul.f32 1.0, %v774
    %777 = vrot.lane.b32.xlu0 %v766, 64
    %v778 = vpop.permute.xlu0 %777
    %v780 = vmul.f32 %v775, %v778
    %782 = vrot.lane.b32.xlu0 %v780, 64
    %v783 = vpop.permute.xlu0 %782
    %v785 = vadd.f32 %v691, %v783
    %v786 = vtanh.pop %v785
    %v787 = vsub.f32 %v618, %v786
    %789 = vrot.lane.b32.xlu0 %v787, 96
    %v790 = vpop.permute.xlu0 %789
    %v792 = vmul.f32 %v775, %v790
    %794 = vrot.lane.b32.xlu0 %v792, 32
    %v795 = vpop.permute.xlu0 %794
    %v797 = vadd.f32 %v786, %v795
    %799 = vrot.lane.b32.xlu0 %v797, 64
    %v800 = vpop.permute.xlu0 %799
    %802 = vst.msk [vmem:[#allocation10] sm:$0xff] %vm81, %v800
    // Predicated region
    $region34: #{tpu_custom_call.1} parent=1 // pred_check
      _
    $region35: #{tpu_custom_call.1} parent=1 // pred_check_branch
      %804 = sbr.rel (0) target = $region37
    $region36: #{tpu_custom_call.1} parent=1 // pred_region
      %s806 = ssub.s32 128, 128
      %807 = vsyncadd [#allocation4], %s806
      %s809 = sshll.u32 [#allocation10], 4
      %s810 = int_to_ptr.vmem [resolvable:$true] %s809
      %812 = dma.vmem_to_hbm [thread:$0]  %s810, 128, %s4, [#allocation4]
    $region37: #{tpu_custom_call.1} parent=1 // pred_fallthru
      _
    // Predicated region
    $region38: #{tpu_custom_call.1} parent=1 // pred_check
      _
    $region39: #{tpu_custom_call.1} parent=1 // pred_check_branch
      %814 = sbr.rel (0) target = $region41
    $region40: #{tpu_custom_call.1} parent=1 // pred_region
      %815 = dma.done [#allocation4], 128
    $region41: #{tpu_custom_call.1} parent=1 // pred_fallthru
      _
    %816 = vsyncpa [#allocation3], 1
    %817 = vsyncpa [#allocation6], 1
    %818 = vsyncpa [#allocation9], 1
    %819 = vsyncpa [#allocation4], 1

</llo_original>
